<compile_context>
chip_gen: v7x
topology: tpu7x:2x2x1
jax: 0.10.0
libtpu: 0.0.40
codegen_flags: <defaults>
</compile_context>

<pallas_src>
import math
import functools

import jax
import jax.numpy as jnp
from jax import lax
from jax.experimental import pallas as pl
from jax.experimental.pallas import tpu as pltpu


def _make_attn_kernel(inv_sqrt_d, with_weights, mxu_bf16):
    """Build the per-(batch, q-tile) kernel.

    Refs (leading batch dim squeezed by the BlockSpecs):
      valid_ref : SMEM int32[B]   scalar-prefetched valid key lengths
      q_ref     : VMEM (tq, D)
      k_ref     : VMEM (K, D)     resident across the Q-tile grid axis
      v_ref     : VMEM (K, V)     resident across the Q-tile grid axis
      o_ref     : VMEM (tq, V)
      w_ref     : VMEM (tq, K)    only when with_weights
    """

    def kernel(valid_ref, q_ref, k_ref, v_ref, o_ref, *maybe_w_ref):
        b = pl.program_id(0)

        # Fold 1/sqrt(d) into q: tq*D multiplies instead of tq*K.
        q = q_ref[...] * jnp.float32(inv_sqrt_d)
        k = k_ref[...]
        if mxu_bf16:
            q = q.astype(jnp.bfloat16)
            k = k.astype(jnp.bfloat16)

        # scores = q @ k^T without materializing a transpose: contract the D
        # axis of both operands directly (MXU consumes k untransposed).
        scores = lax.dot_general(
            q, k, (((1,), (1,)), ((), ())),
            preferred_element_type=jnp.float32)

        # sequence_mask: key positions >= valid_len get -1e6 (as in reference).
        vlen = valid_ref[b]
        key_ids = lax.broadcasted_iota(jnp.int32, scores.shape, 1)  # (tq, K)
        scores = jnp.where(key_ids < vlen, scores, jnp.float32(-1000000.0))

        # Numerically stable softmax, kept in f32 on every TPU generation.
        m = jnp.max(scores, axis=-1, keepdims=True)
        e = jnp.exp(scores - m)
        denom = jnp.sum(e, axis=-1, keepdims=True)
        # Exact reciprocal keeps the f32 path within the 1e-5 reference test;
        # pl.reciprocal(..., approx=True) (EUP vrcp) is available if not needed.
        w = e * pl.reciprocal(denom, approx=False)

        if with_weights:
            maybe_w_ref[0][...] = w.astype(maybe_w_ref[0].dtype)

        v = v_ref[...]
        if mxu_bf16:
            wv = w.astype(jnp.bfloat16)
            v = v.astype(jnp.bfloat16)
        else:
            wv = w.astype(v.dtype)
        o_ref[...] = jnp.dot(
            wv, v, preferred_element_type=jnp.float32).astype(o_ref.dtype)

    return kernel


def _choose_q_tile(Q, K, D, V, weights_bytes, budget_bytes=24 << 20):
    """Largest Q tile (multiple of 8, divisor of Q, <=512) fitting the budget."""
    candidates = [t for t in (512, 256, 128, 64, 32, 16, 8)
                  if t <= Q and Q % t == 0]
    if not candidates:
        candidates = [Q]  # tiny / odd Q: one tile == full extent
    resident = 2 * 4 * (K * D + K * V)  # k, v double-buffered (f32)
    tq = candidates[-1]
    for t in candidates:
        per_step = 2 * (4 * (t * D + t * V) + weights_bytes * t * K)
        if resident + per_step <= budget_bytes:
            tq = t
            break
    per_step = 2 * (4 * (tq * D + tq * V) + weights_bytes * tq * K)
    return tq, resident + per_step


@functools.partial(
    jax.jit, static_argnames=("return_weights", "mxu_bf16", "q_block_size"))
def dot_product_attention(queries, keys, values, valid_lens=None, *,
                          return_weights=True, mxu_bf16=False,
                          q_block_size=None):
    """Pallas equivalent of DotProductAttention.forward (eval mode).

    queries: (B, Q, D), keys: (B, K, D), values: (B, K, V)
    valid_lens: None or int32[B]  (per-batch valid key length)
    Returns (output, attention_weights) when return_weights else output.
    """
    B, Q, D = queries.shape
    _, K, _ = keys.shape
    V = values.shape[-1]

    if valid_lens is None:
        # No masking == every key valid (identical to unmasked softmax).
        valid_lens = jnp.full((B,), K, dtype=jnp.int32)
    else:
        valid_lens = valid_lens.astype(jnp.int32)
    # TODO(synk): 2-D (per-query) valid_lens from the reference is not handled;
    # only the 1-D (per-batch) case is implemented.

    w_bytes = 4 if return_weights else 0
    tq, vmem_needed = _choose_q_tile(Q, K, D, V, max(w_bytes, 4))
    if q_block_size is not None:
        assert Q % q_block_size == 0, "q_block_size must divide Q"
        tq = q_block_size
    nq = Q // tq

    in_specs = [
        pl.BlockSpec((None, tq, D), lambda b, qi, vl: (b, qi, 0)),
        pl.BlockSpec((None, K, D), lambda b, qi, vl: (b, 0, 0)),   # resident
        pl.BlockSpec((None, K, V), lambda b, qi, vl: (b, 0, 0)),   # resident
    ]
    o_spec = pl.BlockSpec((None, tq, V), lambda b, qi, vl: (b, qi, 0))
    if return_weights:
        w_spec = pl.BlockSpec((None, tq, K), lambda b, qi, vl: (b, qi, 0))
        out_specs = (o_spec, w_spec)
        out_shape = (jax.ShapeDtypeStruct((B, Q, V), queries.dtype),
                     jax.ShapeDtypeStruct((B, Q, K), jnp.float32))
    else:
        out_specs = o_spec
        out_shape = jax.ShapeDtypeStruct((B, Q, V), queries.dtype)

    kernel = _make_attn_kernel(1.0 / math.sqrt(D), return_weights, mxu_bf16)

    # Explicit scoped-VMEM limit sized from the tiles, with headroom; capped so
    # it stays safe on v7x (64 MiB physical VMEM per TensorCore).
    vmem_limit = int(min(max(vmem_needed + (4 << 20), 32 << 20), 64 << 20))

    grid_spec = pltpu.PrefetchScalarGridSpec(
        num_scalar_prefetch=1,
        grid=(B, nq),
        in_specs=in_specs,
        out_specs=out_specs,
    )

    return pl.pallas_call(
        kernel,
        grid_spec=grid_spec,
        out_shape=out_shape,
        compiler_params=pltpu.CompilerParams(
            dimension_semantics=("parallel", "parallel"),
            vmem_limit_bytes=vmem_limit),
    )(valid_lens, queries, keys, values)


def _reference(queries, keys, values, valid_lens, precision=None):
    """Pure-JAX reference mirroring the PyTorch code."""
    d = queries.shape[-1]
    scores = jnp.einsum("bqd,bkd->bqk", queries, keys,
                        precision=precision) / math.sqrt(d)
    if valid_lens is not None:
        key_ids = jnp.arange(scores.shape[-1])[None, None, :]
        mask = key_ids < valid_lens[:, None, None]
        scores = jnp.where(mask, scores, -1000000.0)
    w = jax.nn.softmax(scores, axis=-1)
    return jnp.einsum("bqk,bkv->bqv", w, values, precision=precision), w


if __name__ == "__main__":
    # ---- Small deterministic example (matches the module's bmm convention).
    B, Q, K, D, V = 2, 8, 8, 32, 32
    key = jax.random.PRNGKey(0)
    kq, kk, kv = jax.random.split(key, 3)
    queries = jax.random.normal(kq, (B, Q, D), dtype=jnp.float32)
    keys = jax.random.normal(kk, (B, K, D), dtype=jnp.float32)
    values = jax.random.normal(kv, (B, K, V), dtype=jnp.float32)
    valid_lens = jnp.array([3, 6], dtype=jnp.int32)

    out, attn_w = dot_product_attention(queries, keys, values, valid_lens)
    out = jax.block_until_ready(out)
    attn_w = jax.block_until_ready(attn_w)
    ref_out, ref_w = _reference(queries, keys, values, valid_lens)
    assert jnp.allclose(out, ref_out, atol=1e-5, rtol=1e-5), "output mismatch"
    assert jnp.allclose(attn_w, ref_w, atol=1e-5, rtol=1e-5), "weights mismatch"

    # valid_lens=None path.
    out2, _ = dot_product_attention(queries, keys, values, None)
    jax.block_until_ready(out2)
    ref_out2, _ = _reference(queries, keys, values, None)
    assert jnp.allclose(out2, ref_out2, atol=1e-5, rtol=1e-5), "unmasked mismatch"

    # ---- Lane-dense, multi-Q-tile check (exercises grid=(B, Q//tq) residency).
    B2, Q2, K2, D2, V2 = 2, 256, 256, 128, 128
    k1, k2, k3 = jax.random.split(jax.random.PRNGKey(1), 3)
    q_l = jax.random.normal(k1, (B2, Q2, D2), dtype=jnp.float32)
    k_l = jax.random.normal(k2, (B2, K2, D2), dtype=jnp.float32)
    v_l = jax.random.normal(k3, (B2, K2, V2), dtype=jnp.float32)
    vl_l = jnp.array([100, 256], dtype=jnp.int32)

    o3, w3 = dot_product_attention(q_l, k_l, v_l, vl_l, q_block_size=128)
    o3 = jax.block_until_ready(o3)
    ref_o3, ref_w3 = _reference(q_l, k_l, v_l, vl_l,
                                precision=lax.Precision.HIGHEST)
    assert jnp.allclose(o3, ref_o3, atol=1e-4, rtol=1e-4), "tiled output mismatch"
    assert jnp.allclose(w3, ref_w3, atol=1e-4, rtol=1e-4), "tiled weights mismatch"

    # Output-only fast path (no O(B*Q*K) weights writeback to HBM).
    o4 = dot_product_attention(q_l, k_l, v_l, vl_l,
                               return_weights=False, q_block_size=128)
    o4 = jax.block_until_ready(o4)
    assert jnp.allclose(o4, ref_o3, atol=1e-4, rtol=1e-4), "no-weights mismatch"

    # bf16-operand MXU path (v6e/v7x fast path) -- f32 accumulation/softmax.
    o5, _ = dot_product_attention(q_l, k_l, v_l, vl_l,
                                  mxu_bf16=True, q_block_size=128)
    o5 = jax.block_until_ready(o5)
    assert jnp.allclose(o5, ref_o3, atol=5e-2, rtol=5e-2), "bf16 path mismatch"

    print("KERNEL_OK")
</pallas_src>

<mosaic_0001>
module attributes {stable_mosaic.version = 11 : i64} {
  func.func @kernel(%arg0: i32, %arg1: i32, %arg2: memref<2xi32, #tpu.memory_space<smem>>, %arg3: memref<1x8x32xf32, #tpu.memory_space<vmem>>, %arg4: memref<1x8x32xf32, #tpu.memory_space<vmem>>, %arg5: memref<1x8x32xf32, #tpu.memory_space<vmem>>, %arg6: memref<1x8x32xf32, #tpu.memory_space<vmem>>, %arg7: memref<1x8x8xf32, #tpu.memory_space<vmem>>) attributes {dimension_semantics = [#tpu.dimension_semantics<parallel>, #tpu.dimension_semantics<parallel>], iteration_bounds = array<i64: 2, 1>, scalar_prefetch = 1 : i64, scratch_operands = 0 : i64, tpu.core_type = #tpu.core_type<tc>, window_params = [{transform_indices = @transform_0, window_bounds = array<i64: 1, 8, 32>}, {transform_indices = @transform_1, window_bounds = array<i64: 1, 8, 32>}, {transform_indices = @transform_2, window_bounds = array<i64: 1, 8, 32>}, {transform_indices = @transform_3, window_bounds = array<i64: 1, 8, 32>}, {transform_indices = @transform_4, window_bounds = array<i64: 1, 8, 8>}]} {
    %c0 = arith.constant 0 : index
    %c0_0 = arith.constant 0 : index
    %c0_1 = arith.constant 0 : index
    %0 = vector.load %arg3[%c0, %c0_0, %c0_1] : memref<1x8x32xf32, #tpu.memory_space<vmem>>, vector<1x8x32xf32>
    %1 = vector.shape_cast %0 : vector<1x8x32xf32> to vector<8x32xf32>
    %cst = arith.constant 0.176776692 : f32
    %2 = vector.broadcast %cst : f32 to vector<8x32xf32>
    %3 = arith.mulf %1, %2 : vector<8x32xf32>
    %c0_2 = arith.constant 0 : index
    %c0_3 = arith.constant 0 : index
    %c0_4 = arith.constant 0 : index
    %4 = vector.load %arg4[%c0_2, %c0_3, %c0_4] : memref<1x8x32xf32, #tpu.memory_space<vmem>>, vector<1x8x32xf32>
    %5 = vector.shape_cast %4 : vector<1x8x32xf32> to vector<8x32xf32>
    %cst_5 = arith.constant dense<0.000000e+00> : vector<8x8xf32>
    %6 = tpu.matmul %3, %5, %cst_5 {dimension_numbers = #tpu.dot_dimension_numbers<[1], [1], [0], [0], [0, 0, 1, 0], [], []>} : vector<8x32xf32>, vector<8x32xf32>, vector<8x8xf32> -> vector<8x8xf32>
    %7 = arith.index_cast %arg0 : i32 to index
    %8 = memref.load %arg2[%7] : memref<2xi32, #tpu.memory_space<smem>>
    %9 = tpu.iota {dimensions = array<i32: 1>} : vector<8x8xi32>
    %10 = vector.broadcast %8 : i32 to vector<8x8xi32>
    %11 = arith.cmpi slt, %9, %10 : vector<8x8xi32>
    %cst_6 = arith.constant -1.000000e+06 : f32
    %12 = vector.broadcast %cst_6 : f32 to vector<8x8xf32>
    %13 = arith.select %11, %6, %12 : vector<8x8xi1>, vector<8x8xf32>
    %cst_7 = arith.constant dense<0xFF800000> : vector<8xf32>
    %14 = vector.multi_reduction <maximumf>, %13, %cst_7 [1] : vector<8x8xf32> to vector<8xf32>
    %15 = vector.shape_cast %14 : vector<8xf32> to vector<8x1xf32>
    %16 = vector.broadcast %15 : vector<8x1xf32> to vector<8x8xf32>
    %17 = arith.subf %13, %16 : vector<8x8xf32>
    %18 = math.exp %17 : vector<8x8xf32>
    %cst_8 = arith.constant dense<0.000000e+00> : vector<8xf32>
    %19 = vector.multi_reduction <add>, %18, %cst_8 [1] : vector<8x8xf32> to vector<8xf32>
    %20 = vector.shape_cast %19 : vector<8xf32> to vector<8x1xf32>
    %21 = tpu.reciprocal %20 : vector<8x1xf32> -> vector<8x1xf32>
    %22 = vector.broadcast %21 : vector<8x1xf32> to vector<8x8xf32>
    %23 = arith.mulf %18, %22 : vector<8x8xf32>
    %c0_9 = arith.constant 0 : index
    %c0_10 = arith.constant 0 : index
    %c0_11 = arith.constant 0 : index
    %24 = vector.load %arg7[%c0_9, %c0_10, %c0_11] : memref<1x8x8xf32, #tpu.memory_space<vmem>>, vector<1x8x8xf32>
    %25 = vector.shape_cast %24 : vector<1x8x8xf32> to vector<8x8xf32>
    %26 = vector.shape_cast %23 : vector<8x8xf32> to vector<1x8x8xf32>
    tpu.vector_store %arg7[%c0_9, %c0_10, %c0_11], %26 {strides = array<i32>} : memref<1x8x8xf32, #tpu.memory_space<vmem>>, vector<1x8x8xf32>,
    %c0_12 = arith.constant 0 : index
    %c0_13 = arith.constant 0 : index
    %c0_14 = arith.constant 0 : index
    %27 = vector.load %arg5[%c0_12, %c0_13, %c0_14] : memref<1x8x32xf32, #tpu.memory_space<vmem>>, vector<1x8x32xf32>
    %28 = vector.shape_cast %27 : vector<1x8x32xf32> to vector<8x32xf32>
    %cst_15 = arith.constant dense<0.000000e+00> : vector<8x32xf32>
    %29 = tpu.matmul %23, %28, %cst_15 {dimension_numbers = #tpu.dot_dimension_numbers<[1], [0], [0], [1], [0, 0, 1, 1], [], []>} : vector<8x8xf32>, vector<8x32xf32>, vector<8x32xf32> -> vector<8x32xf32>
    %c0_16 = arith.constant 0 : index
    %c0_17 = arith.constant 0 : index
    %c0_18 = arith.constant 0 : index
    %30 = vector.load %arg6[%c0_16, %c0_17, %c0_18] : memref<1x8x32xf32, #tpu.memory_space<vmem>>, vector<1x8x32xf32>
    %31 = vector.shape_cast %30 : vector<1x8x32xf32> to vector<8x32xf32>
    %32 = vector.shape_cast %29 : vector<8x32xf32> to vector<1x8x32xf32>
    tpu.vector_store %arg6[%c0_16, %c0_17, %c0_18], %32 {strides = array<i32>} : memref<1x8x32xf32, #tpu.memory_space<vmem>>, vector<1x8x32xf32>,
    return
  }
  func.func @transform_0(%arg0: i32, %arg1: i32, %arg2: memref<2xi32, #tpu.memory_space<smem>>) -> (i32, i32, i32) {
    %c0_i32 = arith.constant 0 : i32
    %c0_i32_0 = arith.constant 0 : i32
    return %arg0, %arg1, %c0_i32 : i32, i32, i32
  }
  func.func @transform_1(%arg0: i32, %arg1: i32, %arg2: memref<2xi32, #tpu.memory_space<smem>>) -> (i32, i32, i32) {
    %c0_i32 = arith.constant 0 : i32
    %c0_i32_0 = arith.constant 0 : i32
    %c0_i32_1 = arith.constant 0 : i32
    return %arg0, %c0_i32, %c0_i32_0 : i32, i32, i32
  }
  func.func @transform_2(%arg0: i32, %arg1: i32, %arg2: memref<2xi32, #tpu.memory_space<smem>>) -> (i32, i32, i32) {
    %c0_i32 = arith.constant 0 : i32
    %c0_i32_0 = arith.constant 0 : i32
    %c0_i32_1 = arith.constant 0 : i32
    return %arg0, %c0_i32, %c0_i32_0 : i32, i32, i32
  }
  func.func @transform_3(%arg0: i32, %arg1: i32, %arg2: memref<2xi32, #tpu.memory_space<smem>>) -> (i32, i32, i32) {
    %c0_i32 = arith.constant 0 : i32
    %c0_i32_0 = arith.constant 0 : i32
    return %arg0, %arg1, %c0_i32 : i32, i32, i32
  }
  func.func @transform_4(%arg0: i32, %arg1: i32, %arg2: memref<2xi32, #tpu.memory_space<smem>>) -> (i32, i32, i32) {
    %c0_i32 = arith.constant 0 : i32
    %c0_i32_0 = arith.constant 0 : i32
    return %arg0, %arg1, %c0_i32 : i32, i32, i32
  }
}

</mosaic_0001>

<llo_original>
// kernel: dot_product_attention.1
$region0: #{dot_product_attention.1}
  #allocation0 [shape = 'u32[]', space=smem, size = 0x4, offset = 0x4, fixed_abs, tag = 'smem constant byte address 0x4 - core index']
  #allocation1 [shape = 'u32[144,128]{1,0:T(1,128)}', space=vmem, size = 0x12000, scoped, tag = 'internal scratch']
  #allocation2 [shape = 's32[1]{0}', space=sflag, size = 0x4, scoped, tag = 'scoped memory for dot_product_attention.1']
  #allocation3 [shape = 'u8[512]{0}', space=smem, size = 0x200, scoped, tag = 'prefetched SMEM operand 0']
  %s0 = inlined_call_operand.vmem [shape: s32[2], index: 0, kind: input, shape index: {}]
  %s1 = inlined_call_operand.hbm [shape: f32[2,8,32], index: 1, kind: input, shape index: {}]
  %s2 = inlined_call_operand.hbm [shape: f32[2,8,32], index: 2, kind: input, shape index: {}]
  %s3 = inlined_call_operand.hbm [shape: f32[2,8,32], index: 3, kind: input, shape index: {}]
  %s4 = inlined_call_operand.hbm [shape: f32[2,8,32], index: 4, kind: output, shape index: {0}]
  %s5 = inlined_call_operand.hbm [shape: f32[2,8,8], index: 5, kind: output, shape index: {1}]
  %6 = xla_tuple %s4, %s5
  %s7 = sld [smem:[#allocation0]]
  $region65: #{dot_product_attention.1} parent=0
    _
  %s9 = ssub.s32 1, %s7
  %s10 = scalar_select 0, %s9, %s7
  %s11 = sshll.u32 %s0, 4
  %s12 = int_to_ptr.vmem [resolvable:$true] %s11
  %14 = dma.vmem_to_smem %s12, 16, [#allocation3], [#allocation2]
  %15 = dma.done [#allocation2], 16
  %16 = sfence
  $region1: #{dot_product_attention.1} parent=0
    #allocation4 [shape = 'u8[8192]{0}', space=vmem, size = 0x2000, scoped, tag = 'input window, operand 1']
    #allocation5 [shape = 's32[2]{0}', space=sflag, size = 0x8, scoped, tag = 'scoped memory for dot_product_attention.1']
    #allocation6 [shape = 's32[2]{0}', space=sflag, size = 0x8, scoped, tag = 'scoped memory for dot_product_attention.1']
    #allocation7 [shape = 'u8[8192]{0}', space=vmem, size = 0x2000, scoped, tag = 'input window, operand 2']
    #allocation8 [shape = 's32[2]{0}', space=sflag, size = 0x8, scoped, tag = 'scoped memory for dot_product_attention.1']
    #allocation9 [shape = 'u8[8192]{0}', space=vmem, size = 0x2000, scoped, tag = 'input window, operand 3']
    #allocation10 [shape = 'u8[8192]{0}', space=vmem, size = 0x2000, scoped, tag = 'output window, operand 0']
    #allocation11 [shape = 'u8[8192]{0}', space=vmem, size = 0x2000, scoped, tag = 'output window, operand 1']
    #allocation12 [shape = 's32[2]{0}', space=sflag, size = 0x8, scoped, tag = 'scoped memory for dot_product_attention.1']
    %17 = vsyncpa [#allocation5], 0
    %s18 = scalar_lea.sflag [#allocation5], 1
    %19 = vsyncpa %s18, 0
    %20 = vsyncpa [#allocation8], 0
    %s21 = scalar_lea.sflag [#allocation8], 1
    %22 = vsyncpa %s21, 0
    %23 = vsyncpa [#allocation6], 0
    %s24 = scalar_lea.sflag [#allocation6], 1
    %25 = vsyncpa %s24, 0
    %26 = vsyncpa [#allocation12], 0
    %s27 = scalar_lea.sflag [#allocation12], 1
    %28 = vsyncpa %s27, 0
    loop: start=0, step=1, limit=4
    $region2: #{dot_product_attention.1} parent=1 // loop_pre_header
      _
    $region3: #{dot_product_attention.1} parent=1 // loop_header
      %s30 = sphi 0, %s34
      %p31 = scmp.ge.s32.totalorder %s30, 4
      %s37 = sphi 0, %s49
      %s38 = sphi 0, %s45
      %s39 = sphi 0, %s37
      %s40 = sphi 0, %s38
      %s41 = sphi 0, %s39
      %s42 = sphi 0, %s40
      %s54 = sphi 0, %s56
      %s57 = sphi 0, %s54
      %s58 = sphi 0, %s57
      %s74 = sphi 0, %s58
      %s80 = sphi 0, %s82
      %s83 = sphi 0, %s80
      %s84 = sphi 0, %s83
      %s100 = sphi 0, %s84
      %s106 = sphi 0, %s108
      %s109 = sphi 0, %s106
      %s110 = sphi 0, %s109
      %s126 = sphi 0, %s110
      %s134 = sphi 0, %s136
      %s137 = sphi 0, %s134
      %s138 = sphi 0, %s137
      %s154 = sphi 0, %s138
      %s162 = sphi 0, %s164
      %s165 = sphi 0, %s162
      %s166 = sphi 0, %s165
      %s182 = sphi 0, %s166
    $region4: #{dot_product_attention.1} parent=1 // loop_header_branch
      %33 = sbr.rel (%p31) target = $region8
    $region5: #{dot_product_attention.1} parent=1 // loop_body
      %s35 = ssub.s32 %s30, 1
      %s36 = ssub.s32 %s30, 2
      %s43 = sadd.s32 1, %s38
      %p44 = scmp.ge.s32.totalorder %s43, 1
      %s45 = scalar_select %p44, 0, %s43
      %s46 = sadd.s32 1, %s37
      %s47 = scalar_select %p44, %s46, %s37
      %p48 = scmp.ge.s32.totalorder %s47, 2
      %s49 = scalar_select %p48, 0, %s47
      %s50 = ssub.s32 %s37, %s49
      %s51 = ssub.s32 %s38, %s45
      %s52 = sor.u32 %s50, %s51
      %p53 = scmp.eq.s32.totalorder %s52, 0
      %s55 = sadd.s32 %s54, 1
      %s56 = scalar_select %p53, %s54, %s55
      %p59 = pneg %p53
      %p60 = scmp.eq.s32.totalorder %s30, 1
      %p61 = por %p59, %p60
      %p62 = scmp.ne.s32.totalorder %s54, %s57
      %p63 = scmp.eq.s32.totalorder %s30, 0
      %p64 = por %p62, %p63
      %p65 = scmp.ne.s32.totalorder %s54, %s57
      %p66 = scmp.eq.s32.totalorder %s35, 1
      %p67 = por %p65, %p66
      %p68 = scmp.ne.s32.totalorder %s57, %s58
      %p69 = scmp.eq.s32.totalorder %s35, 0
      %p70 = por %p68, %p69
      %p71 = scmp.ne.s32.totalorder %s57, %s58
      %p72 = scmp.eq.s32.totalorder %s36, 1
      %p73 = por %p71, %p72
      %p75 = scmp.ne.s32.totalorder %s58, %s74
      %p76 = scmp.eq.s32.totalorder %s36, 0
      %p77 = por %p75, %p76
      %s78 = ssub.s32 %s37, %s49
      %p79 = scmp.eq.s32.totalorder %s78, 0
      %s81 = sadd.s32 %s80, 1
      %s82 = scalar_select %p79, %s80, %s81
      %p85 = pneg %p79
      %p86 = scmp.eq.s32.totalorder %s30, 1
      %p87 = por %p85, %p86
      %p88 = scmp.ne.s32.totalorder %s80, %s83
      %p89 = scmp.eq.s32.totalorder %s30, 0
      %p90 = por %p88, %p89
      %p91 = scmp.ne.s32.totalorder %s80, %s83
      %p92 = scmp.eq.s32.totalorder %s35, 1
      %p93 = por %p91, %p92
      %p94 = scmp.ne.s32.totalorder %s83, %s84
      %p95 = scmp.eq.s32.totalorder %s35, 0
      %p96 = por %p94, %p95
      %p97 = scmp.ne.s32.totalorder %s83, %s84
      %p98 = scmp.eq.s32.totalorder %s36, 1
      %p99 = por %p97, %p98
      %p101 = scmp.ne.s32.totalorder %s84, %s100
      %p102 = scmp.eq.s32.totalorder %s36, 0
      %p103 = por %p101, %p102
      %s104 = ssub.s32 %s37, %s49
      %p105 = scmp.eq.s32.totalorder %s104, 0
      %s107 = sadd.s32 %s106, 1
      %s108 = scalar_select %p105, %s106, %s107
      %p111 = pneg %p105
      %p112 = scmp.eq.s32.totalorder %s30, 1
      %p113 = por %p111, %p112
      %p114 = scmp.ne.s32.totalorder %s106, %s109
      %p115 = scmp.eq.s32.totalorder %s30, 0
      %p116 = por %p114, %p115
      %p117 = scmp.ne.s32.totalorder %s106, %s109
      %p118 = scmp.eq.s32.totalorder %s35, 1
      %p119 = por %p117, %p118
      %p120 = scmp.ne.s32.totalorder %s109, %s110
      %p121 = scmp.eq.s32.totalorder %s35, 0
      %p122 = por %p120, %p121
      %p123 = scmp.ne.s32.totalorder %s109, %s110
      %p124 = scmp.eq.s32.totalorder %s36, 1
      %p125 = por %p123, %p124
      %p127 = scmp.ne.s32.totalorder %s110, %s126
      %p128 = scmp.eq.s32.totalorder %s36, 0
      %p129 = por %p127, %p128
      %s130 = ssub.s32 %s37, %s49
      %s131 = ssub.s32 %s38, %s45
      %s132 = sor.u32 %s130, %s131
      %p133 = scmp.eq.s32.totalorder %s132, 0
      %s135 = sadd.s32 %s134, 1
      %s136 = scalar_select %p133, %s134, %s135
      %p139 = pneg %p133
      %p140 = scmp.eq.s32.totalorder %s30, 1
      %p141 = por %p139, %p140
      %p142 = scmp.ne.s32.totalorder %s134, %s137
      %p143 = scmp.eq.s32.totalorder %s30, 0
      %p144 = por %p142, %p143
      %p145 = scmp.ne.s32.totalorder %s134, %s137
      %p146 = scmp.eq.s32.totalorder %s35, 1
      %p147 = por %p145, %p146
      %p148 = scmp.ne.s32.totalorder %s137, %s138
      %p149 = scmp.eq.s32.totalorder %s35, 0
      %p150 = por %p148, %p149
      %p151 = scmp.ne.s32.totalorder %s137, %s138
      %p152 = scmp.eq.s32.totalorder %s36, 1
      %p153 = por %p151, %p152
      %p155 = scmp.ne.s32.totalorder %s138, %s154
      %p156 = scmp.eq.s32.totalorder %s36, 0
      %p157 = por %p155, %p156
      %s158 = ssub.s32 %s37, %s49
      %s159 = ssub.s32 %s38, %s45
      %s160 = sor.u32 %s158, %s159
      %p161 = scmp.eq.s32.totalorder %s160, 0
      %s163 = sadd.s32 %s162, 1
      %s164 = scalar_select %p161, %s162, %s163
      %p167 = pneg %p161
      %p168 = scmp.eq.s32.totalorder %s30, 1
      %p169 = por %p167, %p168
      %p170 = scmp.ne.s32.totalorder %s162, %s165
      %p171 = scmp.eq.s32.totalorder %s30, 0
      %p172 = por %p170, %p171
      %p173 = scmp.ne.s32.totalorder %s162, %s165
      %p174 = scmp.eq.s32.totalorder %s35, 1
      %p175 = por %p173, %p174
      %p176 = scmp.ne.s32.totalorder %s165, %s166
      %p177 = scmp.eq.s32.totalorder %s35, 0
      %p178 = por %p176, %p177
      %p179 = scmp.ne.s32.totalorder %s165, %s166
      %p180 = scmp.eq.s32.totalorder %s36, 1
      %p181 = por %p179, %p180
      %p183 = scmp.ne.s32.totalorder %s166, %s182
      %p184 = scmp.eq.s32.totalorder %s36, 0
      %p185 = por %p183, %p184
      %p186 = scmp.le.s32.totalorder 1, %s30
      %p187 = scmp.lt.s32.totalorder %s30, 3
      %p188 = pnand %p186, %p187
      %p189 = pneg %p188
      // Predicated region
      $region9: #{dot_product_attention.1} parent=5 // pred_check
        _
      $region10: #{dot_product_attention.1} parent=5 // pred_check_branch
        %191 = sbr.rel (%p188) target = $region12
      $region11: #{dot_product_attention.1} parent=5 // pred_region
        %s192 = ssub.s32 %s30, 1
      $region12: #{dot_product_attention.1} parent=5 // pred_fallthru
        _
      %p193 = scmp.lt.s32.totalorder %s30, 2
      // Predicated region
      $region13: #{dot_product_attention.1} parent=5 // pred_check
        %p194 = pneg %p193
      $region14: #{dot_product_attention.1} parent=5 // pred_check_branch
        %196 = sbr.rel (%p194) target = $region16
      $region15: #{dot_product_attention.1} parent=5 // pred_region
        // Predicated region
        $region17: #{dot_product_attention.1} parent=15 // pred_check
          %p197 = pneg %p64
        $region18: #{dot_product_attention.1} parent=15 // pred_check_branch
          %199 = sbr.rel (%p197) target = $region20
        $region19: #{dot_product_attention.1} parent=15 // pred_region
          %s200 = sand.u32 %s54, 1
          %s201 = scalar_lea.sflag [#allocation5], %s200
          %s202 = sand.u32 %s54, 1
          %s203 = smul.addr %s202, 8
          %s204 = scalar_lea.vmem [#allocation4], %s203
          %s206 = ssub.s32 128, 128
          %207 = vsyncadd %s201, %s206
          %s208 = sadd.s32 %s38, %s37
          %s209 = smul.addr %s208, 128
          %s210 = scalar_lea.hbm %s1, %s209
          %s212 = sshll.u32 %s204, 4
          %s213 = int_to_ptr.vmem [resolvable:$true] %s212
          %215 = dma.hbm_to_vmem [thread:$0]  %s210, 128, %s213, %s201
        $region20: #{dot_product_attention.1} parent=15 // pred_fallthru
          _
        // Predicated region
        $region21: #{dot_product_attention.1} parent=15 // pred_check
          %p216 = pneg %p90
        $region22: #{dot_product_attention.1} parent=15 // pred_check_branch
          %218 = sbr.rel (%p216) target = $region24
        $region23: #{dot_product_attention.1} parent=15 // pred_region
          %s219 = sand.u32 %s30, 1
          %s220 = scalar_lea.sflag [#allocation8], %s219
          %s221 = sand.u32 %s80, 1
          %s222 = smul.addr %s221, 8
          %s223 = scalar_lea.vmem [#allocation7], %s222
          %s225 = ssub.s32 128, 128
          %226 = vsyncadd %s220, %s225
          %s227 = smul.addr %s37, 128
          %s228 = scalar_lea.hbm %s2, %s227
          %s230 = sshll.u32 %s223, 4
          %s231 = int_to_ptr.vmem [resolvable:$true] %s230
          %233 = dma.hbm_to_vmem [thread:$0]  %s228, 128, %s231, %s220
        $region24: #{dot_product_attention.1} parent=15 // pred_fallthru
          _
        // Predicated region
        $region25: #{dot_product_attention.1} parent=15 // pred_check
          %p234 = pneg %p116
        $region26: #{dot_product_attention.1} parent=15 // pred_check_branch
          %236 = sbr.rel (%p234) target = $region28
        $region27: #{dot_product_attention.1} parent=15 // pred_region
          %s237 = sand.u32 %s30, 1
          %s238 = scalar_lea.sflag [#allocation8], %s237
          %s239 = sand.u32 %s106, 1
          %s240 = smul.addr %s239, 8
          %s241 = scalar_lea.vmem [#allocation9], %s240
          %s243 = ssub.s32 128, 128
          %244 = vsyncadd %s238, %s243
          %s245 = smul.addr %s37, 128
          %s246 = scalar_lea.hbm %s3, %s245
          %s248 = sshll.u32 %s241, 4
          %s249 = int_to_ptr.vmem [resolvable:$true] %s248
          %251 = dma.hbm_to_vmem [thread:$0]  %s246, 128, %s249, %s238
        $region28: #{dot_product_attention.1} parent=15 // pred_fallthru
          _
      $region16: #{dot_product_attention.1} parent=5 // pred_fallthru
        _
      %p252 = scmp.le.s32.totalorder 1, %s30
      %p253 = scmp.lt.s32.totalorder %s30, 3
      %p254 = pnand %p252, %p253
      %p255 = pneg %p254
      // Predicated region
      $region29: #{dot_product_attention.1} parent=5 // pred_check
        _
      $region30: #{dot_product_attention.1} parent=5 // pred_check_branch
        %257 = sbr.rel (%p254) target = $region32
      $region31: #{dot_product_attention.1} parent=5 // pred_region
        %s258 = ssub.s32 %s30, 1
        %s259 = sand.u32 %s57, 1
        %s260 = scalar_lea.sflag [#allocation5], %s259
        %s261 = sand.u32 %s57, 1
        %s262 = smul.addr %s261, 8
        %s263 = scalar_lea.vmem [#allocation4], %s262
        // Predicated region
        $region33: #{dot_product_attention.1} parent=31 // pred_check
          %p264 = pneg %p70
        $region34: #{dot_product_attention.1} parent=31 // pred_check_branch
          %266 = sbr.rel (%p264) target = $region36
        $region35: #{dot_product_attention.1} parent=31 // pred_region
          %267 = dma.done %s260, 128
        $region36: #{dot_product_attention.1} parent=31 // pred_fallthru
          _
        %s268 = sand.u32 %s35, 1
        %s269 = scalar_lea.sflag [#allocation8], %s268
        %s270 = sand.u32 %s83, 1
        %s271 = smul.addr %s270, 8
        %s272 = scalar_lea.vmem [#allocation7], %s271
        // Predicated region
        $region37: #{dot_product_attention.1} parent=31 // pred_check
          %p273 = pneg %p96
        $region38: #{dot_product_attention.1} parent=31 // pred_check_branch
          %275 = sbr.rel (%p273) target = $region40
        $region39: #{dot_product_attention.1} parent=31 // pred_region
          %276 = dma.done %s269, 128
        $region40: #{dot_product_attention.1} parent=31 // pred_fallthru
          _
        %s277 = sand.u32 %s35, 1
        %s278 = scalar_lea.sflag [#allocation8], %s277
        %s279 = sand.u32 %s109, 1
        %s280 = smul.addr %s279, 8
        %s281 = scalar_lea.vmem [#allocation9], %s280
        // Predicated region
        $region41: #{dot_product_attention.1} parent=31 // pred_check
          %p282 = pneg %p122
        $region42: #{dot_product_attention.1} parent=31 // pred_check_branch
          %284 = sbr.rel (%p282) target = $region44
        $region43: #{dot_product_attention.1} parent=31 // pred_region
          %285 = dma.done %s278, 128
        $region44: #{dot_product_attention.1} parent=31 // pred_fallthru
          _
        %s286 = sand.u32 %s57, 1
        %s287 = scalar_lea.sflag [#allocation5], %s286
        %s288 = sand.u32 %s57, 1
        %s289 = smul.addr %s288, 8
        %s290 = scalar_lea.vmem [#allocation4], %s289
        %p291 = pneg %p70
        %p292 = pneg %p67
        %s293 = sand.u32 %s35, 1
        %s294 = scalar_lea.sflag [#allocation8], %s293
        %s295 = sand.u32 %s83, 1
        %s296 = smul.addr %s295, 8
        %s297 = scalar_lea.vmem [#allocation7], %s296
        %p298 = pneg %p96
        %p299 = pneg %p93
        %s300 = sand.u32 %s35, 1
        %s301 = scalar_lea.sflag [#allocation8], %s300
        %s302 = sand.u32 %s109, 1
        %s303 = smul.addr %s302, 8
        %s304 = scalar_lea.vmem [#allocation9], %s303
        %p305 = pneg %p122
        %p306 = pneg %p119
        %p307 = pneg %p150
        %p308 = pneg %p147
        %s309 = sand.u32 %s137, 1
        %s310 = scalar_lea.sflag [#allocation6], %s309
        %s311 = sand.u32 %s137, 1
        %s312 = smul.addr %s311, 8
        %s313 = scalar_lea.vmem [#allocation10], %s312
        %p314 = pneg %p178
        %p315 = pneg %p175
        %s316 = sand.u32 %s165, 1
        %s317 = scalar_lea.sflag [#allocation12], %s316
        %s318 = sand.u32 %s165, 1
        %s319 = smul.addr %s318, 8
        %s320 = scalar_lea.vmem [#allocation11], %s319
        %v321 = vld [vmem:[%s263] sm:$0xff]
        %v322 = vmul.f32 %v321, 0.17677669
        %v323 = vld [vmem:[%s272] sm:$0xff]
        %vm324 = vcmask 261120
        %v326 = vsel %vm324, %v322, 0
        %v329 = vsel %vm324, %v323, 0
        %331 = vmatprep.subr.mxu0 0.0
        %332 = vmatpush1.xpose.msra.mxu0 %v329
        %333 = vmatprep.subr.mxu0 0.0
        %334 = vmatpush1.xpose.msra.mxu0 0.0
        %335 = vmatprep.subr.mxu0 0.0
        %336 = vmatpush1.xpose.msra.mxu0 0.0
        %337 = vmatprep.subr.mxu0 0.0
        %338 = vmatpush1.xpose.msra.mxu0 0.0
        %339 = vmatprep.subr.mxu0 0.0
        %340 = vmatpush1.xpose.msra.mxu0 0.0
        %341 = vmatprep.subr.mxu0 0.0
        %342 = vmatpush1.xpose.msra.mxu0 0.0
        %343 = vmatprep.subr.mxu0 0.0
        %344 = vmatpush1.xpose.msra.mxu0 0.0
        %345 = vmatprep.subr.mxu0 0.0
        %346 = vmatpush1.xpose.msra.mxu0 0.0
        %347 = vmatprep.subr.mxu0 0.0
        %348 = vmatpush1.xpose.msra.mxu0 0.0
        %349 = vmatprep.subr.mxu0 0.0
        %350 = vmatpush1.xpose.msra.mxu0 0.0
        %351 = vmatprep.subr.mxu0 0.0
        %352 = vmatpush1.xpose.msra.mxu0 0.0
        %353 = vmatprep.subr.mxu0 0.0
        %354 = vmatpush1.xpose.msra.mxu0 0.0
        %355 = vmatprep.subr.mxu0 0.0
        %356 = vmatpush1.xpose.msra.mxu0 0.0
        %357 = vmatprep.subr.mxu0 0.0
        %358 = vmatpush1.xpose.msra.mxu0 0.0
        %359 = vmatprep.subr.mxu0 0.0
        %360 = vmatpush1.xpose.msra.mxu0 0.0
        %361 = vmatprep.subr.mxu0 0.0
        %362 = vmatpush1.xpose.msra.mxu0 0.0
        %363 = vmatprep.subr.mxu0 0.0
        %364 = vmatpush1.xpose.msra.mxu0 0.0
        %365 = vmatprep.subr.mxu0 0.0
        %366 = vmatpush1.xpose.msra.mxu0 0.0
        %367 = vmatprep.subr.mxu0 0.0
        %368 = vmatpush1.xpose.msra.mxu0 0.0
        %369 = vmatprep.subr.mxu0 0.0
        %370 = vmatpush1.xpose.msra.mxu0 0.0
        %371 = vmatprep.subr.mxu0 0.0
        %372 = vmatpush1.xpose.msra.mxu0 0.0
        %373 = vmatprep.subr.mxu0 0.0
        %374 = vmatpush1.xpose.msra.mxu0 0.0
        %375 = vmatprep.subr.mxu0 0.0
        %376 = vmatpush1.xpose.msra.mxu0 0.0
        %377 = vmatprep.subr.mxu0 0.0
        %378 = vmatpush1.xpose.msra.mxu0 0.0
        %379 = vmatprep.subr.mxu0 0.0
        %380 = vmatpush1.xpose.msra.mxu0 0.0
        %381 = vmatprep.subr.mxu0 0.0
        %382 = vmatpush1.xpose.msra.mxu0 0.0
        %383 = vmatprep.subr.mxu0 0.0
        %384 = vmatpush1.xpose.msra.mxu0 0.0
        %385 = vmatprep.subr.mxu0 0.0
        %386 = vmatpush1.xpose.msra.mxu0 0.0
        %387 = vmatprep.subr.mxu0 0.0
        %388 = vmatpush1.xpose.msra.mxu0 0.0
        %389 = vmatprep.subr.mxu0 0.0
        %390 = vmatpush1.xpose.msra.mxu0 0.0
        %391 = vmatprep.subr.mxu0 0.0
        %392 = vmatpush1.xpose.msra.mxu0 0.0
        %393 = vmatprep.subr.mxu0 0.0
        %394 = vmatpush1.xpose.msra.mxu0 0.0
        %395 = vmatprep.mubr.f32.mxu0 0.0
        %396 = vmatmul.mubr.f32.gmra.mrb[0].mxu0 %v326
        %v397 = vpop.f32.mrb[0].mxu0
        %v398 = vadd.f32 0.0, %v397
        %v399 = vpop.f32.mrb[0].mxu0
        %400 = vdwg.mxu0
        %s401 = sld [smem:[#allocation3 + %s39]]
        %v402 = vlaneseq
        %v403 = vand.u32 %v402, 127
        %v404 = vstv %s401
        %vm405 = vcmp.lt.s32.totalorder %v403, %v404
        %v406 = vsel %vm405, %v398, -1000000.0
        %vm407 = vcmask 64512
        %v408 = vsel %vm407, %v406, -inf
        %409 = vmax.xlane.f32.xlu0 %v408
        %v410 = vpop.xlane.xlu0 %409
        %v411 = vsub.f32 %v406, %v410
        %v412 = vmul.f32 %v411, 1.442695
        %v413 = vpow.pop %v412
        %v414 = vsel %vm407, %v413, 0.0
        %415 = vadd.xlane.f32.xlu0 %v414
        %v416 = vpop.xlane.xlu0 %415
        %v417 = vrcp.pop %v416
        %v418 = vmul.f32 %v413, %v417
        %419 = vst.msk [vmem:[%s320] sm:$0xff] %vm407, %v418
        %v420 = vld [vmem:[%s281] sm:$0xff]
        %v422 = vsel %vm407, %v418, 0
        %424 = vmatprep.subr.mxu0 0.0
        %425 = vmatpush1.msra.mxu0 %v420
        %426 = vmatprep.subr.mxu0 0.0
        %427 = vmatpush1.msra.mxu0 0.0
        %428 = vmatprep.subr.mxu0 0.0
        %429 = vmatpush1.msra.mxu0 0.0
        %430 = vmatprep.subr.mxu0 0.0
        %431 = vmatpush1.msra.mxu0 0.0
        %432 = vmatprep.subr.mxu0 0.0
        %433 = vmatpush1.msra.mxu0 0.0
        %434 = vmatprep.subr.mxu0 0.0
        %435 = vmatpush1.msra.mxu0 0.0
        %436 = vmatprep.subr.mxu0 0.0
        %437 = vmatpush1.msra.mxu0 0.0
        %438 = vmatprep.subr.mxu0 0.0
        %439 = vmatpush1.msra.mxu0 0.0
        %440 = vmatprep.subr.mxu0 0.0
        %441 = vmatpush1.msra.mxu0 0.0
        %442 = vmatprep.subr.mxu0 0.0
        %443 = vmatpush1.msra.mxu0 0.0
        %444 = vmatprep.subr.mxu0 0.0
        %445 = vmatpush1.msra.mxu0 0.0
        %446 = vmatprep.subr.mxu0 0.0
        %447 = vmatpush1.msra.mxu0 0.0
        %448 = vmatprep.subr.mxu0 0.0
        %449 = vmatpush1.msra.mxu0 0.0
        %450 = vmatprep.subr.mxu0 0.0
        %451 = vmatpush1.msra.mxu0 0.0
        %452 = vmatprep.subr.mxu0 0.0
        %453 = vmatpush1.msra.mxu0 0.0
        %454 = vmatprep.subr.mxu0 0.0
        %455 = vmatpush1.msra.mxu0 0.0
        %456 = vmatprep.subr.mxu0 0.0
        %457 = vmatpush1.msra.mxu0 0.0
        %458 = vmatprep.subr.mxu0 0.0
        %459 = vmatpush1.msra.mxu0 0.0
        %460 = vmatprep.subr.mxu0 0.0
        %461 = vmatpush1.msra.mxu0 0.0
        %462 = vmatprep.subr.mxu0 0.0
        %463 = vmatpush1.msra.mxu0 0.0
        %464 = vmatprep.subr.mxu0 0.0
        %465 = vmatpush1.msra.mxu0 0.0
        %466 = vmatprep.subr.mxu0 0.0
        %467 = vmatpush1.msra.mxu0 0.0
        %468 = vmatprep.subr.mxu0 0.0
        %469 = vmatpush1.msra.mxu0 0.0
        %470 = vmatprep.subr.mxu0 0.0
        %471 = vmatpush1.msra.mxu0 0.0
        %472 = vmatprep.subr.mxu0 0.0
        %473 = vmatpush1.msra.mxu0 0.0
        %474 = vmatprep.subr.mxu0 0.0
        %475 = vmatpush1.msra.mxu0 0.0
        %476 = vmatprep.subr.mxu0 0.0
        %477 = vmatpush1.msra.mxu0 0.0
        %478 = vmatprep.subr.mxu0 0.0
        %479 = vmatpush1.msra.mxu0 0.0
        %480 = vmatprep.subr.mxu0 0.0
        %481 = vmatpush1.msra.mxu0 0.0
        %482 = vmatprep.subr.mxu0 0.0
        %483 = vmatpush1.msra.mxu0 0.0
        %484 = vmatprep.subr.mxu0 0.0
        %485 = vmatpush1.msra.mxu0 0.0
        %486 = vmatprep.subr.mxu0 0.0
        %487 = vmatpush1.msra.mxu0 0.0
        %488 = vmatprep.mubr.f32.mxu0 0.0
        %489 = vmatmul.mubr.f32.gmra.mrb[0].mxu0 %v422
        %v490 = vpop.f32.mrb[0].mxu0
        %v491 = vadd.f32 0.0, %v490
        %v492 = vpop.f32.mrb[0].mxu0
        %493 = vdwg.mxu0
        %494 = vst.msk [vmem:[%s313] sm:$0xff] %vm324, %v491
        %s495 = sand.u32 %s137, 1
        %s496 = scalar_lea.sflag [#allocation6], %s495
        %s497 = sand.u32 %s137, 1
        %s498 = smul.addr %s497, 8
        %s499 = scalar_lea.vmem [#allocation10], %s498
        %s500 = sand.u32 %s165, 1
        %s501 = scalar_lea.sflag [#allocation12], %s500
        %s502 = sand.u32 %s165, 1
        %s503 = smul.addr %s502, 8
        %s504 = scalar_lea.vmem [#allocation11], %s503
        // Predicated region
        $region45: #{dot_product_attention.1} parent=31 // pred_check
          %p505 = pneg %p147
        $region46: #{dot_product_attention.1} parent=31 // pred_check_branch
          %507 = sbr.rel (%p505) target = $region48
        $region47: #{dot_product_attention.1} parent=31 // pred_region
          %s509 = ssub.s32 128, 128
          %510 = vsyncadd %s496, %s509
          %s511 = sadd.s32 %s40, %s39
          %s512 = smul.addr %s511, 128
          %s513 = scalar_lea.hbm %s4, %s512
          %s515 = sshll.u32 %s499, 4
          %s516 = int_to_ptr.vmem [resolvable:$true] %s515
          %518 = dma.vmem_to_hbm [thread:$0]  %s516, 128, %s513, %s496
        $region48: #{dot_product_attention.1} parent=31 // pred_fallthru
          _
        // Predicated region
        $region49: #{dot_product_attention.1} parent=31 // pred_check
          %p519 = pneg %p175
        $region50: #{dot_product_attention.1} parent=31 // pred_check_branch
          %521 = sbr.rel (%p519) target = $region52
        $region51: #{dot_product_attention.1} parent=31 // pred_region
          %s523 = ssub.s32 128, 128
          %524 = vsyncadd %s501, %s523
          %s525 = sadd.s32 %s40, %s39
          %s526 = smul.addr %s525, 128
          %s527 = scalar_lea.hbm %s5, %s526
          %s529 = sshll.u32 %s504, 4
          %s530 = int_to_ptr.vmem [resolvable:$true] %s529
          %532 = dma.vmem_to_hbm [thread:$0]  %s530, 128, %s527, %s501
        $region52: #{dot_product_attention.1} parent=31 // pred_fallthru
          _
      $region32: #{dot_product_attention.1} parent=5 // pred_fallthru
        _
      %p533 = scmp.le.s32.totalorder 2, %s30
      // Predicated region
      $region53: #{dot_product_attention.1} parent=5 // pred_check
        %p534 = pneg %p533
      $region54: #{dot_product_attention.1} parent=5 // pred_check_branch
        %536 = sbr.rel (%p534) target = $region56
      $region55: #{dot_product_attention.1} parent=5 // pred_region
        %s537 = ssub.s32 %s30, 2
        // Predicated region
        $region57: #{dot_product_attention.1} parent=55 // pred_check
          %p538 = pneg %p153
        $region58: #{dot_product_attention.1} parent=55 // pred_check_branch
          %540 = sbr.rel (%p538) target = $region60
        $region59: #{dot_product_attention.1} parent=55 // pred_region
          %s541 = sand.u32 %s138, 1
          %s542 = scalar_lea.sflag [#allocation6], %s541
          %s543 = sand.u32 %s138, 1
          %s544 = smul.addr %s543, 8
          %s545 = scalar_lea.vmem [#allocation10], %s544
          %546 = dma.done %s542, 128
        $region60: #{dot_product_attention.1} parent=55 // pred_fallthru
          _
        // Predicated region
        $region61: #{dot_product_attention.1} parent=55 // pred_check
          %p547 = pneg %p181
        $region62: #{dot_product_attention.1} parent=55 // pred_check_branch
          %549 = sbr.rel (%p547) target = $region64
        $region63: #{dot_product_attention.1} parent=55 // pred_region
          %s550 = sand.u32 %s166, 1
          %s551 = scalar_lea.sflag [#allocation12], %s550
          %s552 = sand.u32 %s166, 1
          %s553 = smul.addr %s552, 8
          %s554 = scalar_lea.vmem [#allocation11], %s553
          %555 = dma.done %s551, 128
        $region64: #{dot_product_attention.1} parent=55 // pred_fallthru
          _
      $region56: #{dot_product_attention.1} parent=5 // pred_fallthru
        _
    $region6: #{dot_product_attention.1} parent=1 // loop_footer
      %s34 = sadd.s32 1, %s30
    $region7: #{dot_product_attention.1} parent=1 // loop_footer_branch
      %29 = sbr.rel target = $region3
    $region8: #{dot_product_attention.1} parent=1 // loop_exit
      _
    %556 = vsyncpa [#allocation5], 1
    %s557 = scalar_lea.sflag [#allocation5], 1
    %558 = vsyncpa %s557, 1
    %559 = vsyncpa [#allocation8], 1
    %s560 = scalar_lea.sflag [#allocation8], 1
    %561 = vsyncpa %s560, 1
    %562 = vsyncpa [#allocation6], 1
    %s563 = scalar_lea.sflag [#allocation6], 1
    %564 = vsyncpa %s563, 1
    %565 = vsyncpa [#allocation12], 1
    %s566 = scalar_lea.sflag [#allocation12], 1
    %567 = vsyncpa %s566, 1

</llo_original>
